<compile_context>
chip_gen: v6e
topology: v6e:2x2x1
jax: 0.10.0
libtpu: 0.0.40
codegen_flags: <defaults>
</compile_context>

<pallas_src>
import functools

import jax
import jax.numpy as jnp
from jax.experimental import pallas as pl
from jax.experimental.pallas import tpu as pltpu


_LANES = 128
# (2048, 128) f32 tile = 1 MiB per operand; 3 operands double-buffered = 6 MiB.
_MAX_BLOCK_ROWS = 2048


def _round_up(x, m):
    return (x + m - 1) // m * m


def _trimmed_mae_kernel(pred_ref, tgt_ref, mask_ref, num_ref, den_ref):
    # pred/tgt/mask refs: (block_rows, 128) f32 tiles of the flattened inputs.
    # num/den refs:       (1, 8, 128) f32 per-program partial-sum slabs.
    p = pred_ref[...]
    t = tgt_ref[...]
    m = mask_ref[...]

    valid = m != 0.0
    resid = jnp.where(valid, jnp.abs(p - t), 0.0)   # VPU-only; padded lanes have m==0

    rows = resid.shape[0]
    # (rows, 128) -> (rows//8, 8, 128) is a free relayout (rows already map to
    # sublanes in vreg order); the axis-0 sum is pure elementwise VPU adds across
    # vregs, leaving the single cross-lane/sublane reduce to the tiny wrapper sum.
    num_ref[0] = jnp.sum(resid.reshape(rows // 8, 8, _LANES), axis=0)
    den_ref[0] = jnp.sum(m.reshape(rows // 8, 8, _LANES), axis=0)


@functools.partial(jax.jit, static_argnames=())
def trimmed_mae_loss(prediction, target, mask):
    """prediction/target/mask: (N, H, W); mask 0/1-valued. Batch-based reduction."""
    total = prediction.size

    pred = prediction.reshape(-1).astype(jnp.float32)
    tgt = target.reshape(-1).astype(jnp.float32)
    msk = mask.reshape(-1).astype(jnp.float32)

    rows = pl.cdiv(total, _LANES)
    block_rows = min(_round_up(rows, 8), _MAX_BLOCK_ROWS)   # sublane-full blocks
    rows_padded = _round_up(rows, block_rows)
    padded = rows_padded * _LANES
    grid = rows_padded // block_rows

    pad = padded - total
    if pad:
        # Padding with mask == 0 keeps the padded lanes out of both sums.
        pred = jnp.pad(pred, (0, pad))
        tgt = jnp.pad(tgt, (0, pad))
        msk = jnp.pad(msk, (0, pad))

    pred2 = pred.reshape(rows_padded, _LANES)
    tgt2 = tgt.reshape(rows_padded, _LANES)
    msk2 = msk.reshape(rows_padded, _LANES)

    num_parts, den_parts = pl.pallas_call(
        _trimmed_mae_kernel,
        out_shape=(
            jax.ShapeDtypeStruct((grid, 8, _LANES), jnp.float32),
            jax.ShapeDtypeStruct((grid, 8, _LANES), jnp.float32),
        ),
        grid_spec=pltpu.PrefetchScalarGridSpec(
            num_scalar_prefetch=0,
            grid=(grid,),
            in_specs=[
                pl.BlockSpec((block_rows, _LANES), lambda i: (i, 0)),
                pl.BlockSpec((block_rows, _LANES), lambda i: (i, 0)),
                pl.BlockSpec((block_rows, _LANES), lambda i: (i, 0)),
            ],
            out_specs=[
                pl.BlockSpec((1, 8, _LANES), lambda i: (i, 0, 0)),
                pl.BlockSpec((1, 8, _LANES), lambda i: (i, 0, 0)),
            ],
        ),
        compiler_params=pltpu.CompilerParams(
            # Per-program partial sums -> no cross-step accumulation, so the
            # grid axis can be sharded across TensorCores on v7x.
            dimension_semantics=("parallel",),
        ),
    )(pred2, tgt2, msk2)

    num = jnp.sum(num_parts)
    den = jnp.sum(den_parts)
    # reduction_batch_based: divisor = sum(2*M) = 2*sum(mask); 0 if divisor == 0.
    return jnp.where(den == 0.0, jnp.float32(0.0), num / (2.0 * den))


def _trimmed_mae_loss_ref(prediction, target, mask):
    """Pure-JAX reference mirroring the executed PyTorch forward."""
    p = prediction.astype(jnp.float32)
    t = target.astype(jnp.float32)
    m = mask.astype(jnp.float32)
    resid = jnp.where(m != 0.0, jnp.abs(p - t), 0.0)
    num = jnp.sum(resid)
    den = jnp.sum(m)
    return jnp.where(den == 0.0, jnp.float32(0.0), num / (2.0 * den))


if __name__ == "__main__":
    key = jax.random.PRNGKey(0)
    k1, k2, k3 = jax.random.split(key, 3)

    N, H, W = 2, 16, 16
    prediction = jax.random.normal(k1, (N, H, W), dtype=jnp.float32)
    target = jax.random.normal(k2, (N, H, W), dtype=jnp.float32)
    mask = (jax.random.uniform(k3, (N, H, W)) > 0.25).astype(jnp.float32)

    loss = trimmed_mae_loss(prediction, target, mask)
    jax.block_until_ready(loss)

    ref = _trimmed_mae_loss_ref(prediction, target, mask)
    assert jnp.allclose(loss, ref, rtol=1e-5, atol=1e-6), (loss, ref)

    print("KERNEL_OK")
</pallas_src>

<mosaic_0001>
module attributes {stable_mosaic.version = 11 : i64} {
  func.func @_trimmed_mae_kernel(%arg0: i32, %arg1: memref<8x128xf32, #tpu.memory_space<vmem>>, %arg2: memref<8x128xf32, #tpu.memory_space<vmem>>, %arg3: memref<8x128xf32, #tpu.memory_space<vmem>>, %arg4: memref<1x8x128xf32, #tpu.memory_space<vmem>>, %arg5: memref<1x8x128xf32, #tpu.memory_space<vmem>>) attributes {dimension_semantics = [#tpu.dimension_semantics<parallel>], iteration_bounds = array<i64: 1>, scalar_prefetch = 0 : i64, scratch_operands = 0 : i64, tpu.core_type = #tpu.core_type<tc>, window_params = [{transform_indices = @transform_0, window_bounds = array<i64: 8, 128>}, {transform_indices = @transform_1, window_bounds = array<i64: 8, 128>}, {transform_indices = @transform_2, window_bounds = array<i64: 8, 128>}, {transform_indices = @transform_3, window_bounds = array<i64: 1, 8, 128>}, {transform_indices = @transform_4, window_bounds = array<i64: 1, 8, 128>}]} {
    %c0 = arith.constant 0 : index
    %c0_0 = arith.constant 0 : index
    %0 = vector.load %arg1[%c0, %c0_0] : memref<8x128xf32, #tpu.memory_space<vmem>>, vector<8x128xf32>
    %c0_1 = arith.constant 0 : index
    %c0_2 = arith.constant 0 : index
    %1 = vector.load %arg2[%c0_1, %c0_2] : memref<8x128xf32, #tpu.memory_space<vmem>>, vector<8x128xf32>
    %c0_3 = arith.constant 0 : index
    %c0_4 = arith.constant 0 : index
    %2 = vector.load %arg3[%c0_3, %c0_4] : memref<8x128xf32, #tpu.memory_space<vmem>>, vector<8x128xf32>
    %cst = arith.constant 0.000000e+00 : f32
    %3 = vector.broadcast %cst : f32 to vector<8x128xf32>
    %4 = arith.cmpf one, %2, %3 : vector<8x128xf32>
    %5 = arith.subf %0, %1 : vector<8x128xf32>
    %6 = math.absf %5 : vector<8x128xf32>
    %cst_5 = arith.constant 0.000000e+00 : f32
    %7 = vector.broadcast %cst_5 : f32 to vector<8x128xf32>
    %8 = arith.select %4, %6, %7 : vector<8x128xi1>, vector<8x128xf32>
    %9 = vector.shape_cast %8 : vector<8x128xf32> to vector<1x8x128xf32>
    %cst_6 = arith.constant dense<0.000000e+00> : vector<8x128xf32>
    %10 = vector.multi_reduction <add>, %9, %cst_6 [0] : vector<1x8x128xf32> to vector<8x128xf32>
    %c0_7 = arith.constant 0 : index
    %c0_8 = arith.constant 0 : index
    %c0_9 = arith.constant 0 : index
    %11 = vector.load %arg4[%c0_7, %c0_8, %c0_9] : memref<1x8x128xf32, #tpu.memory_space<vmem>>, vector<1x8x128xf32>
    %12 = vector.shape_cast %11 : vector<1x8x128xf32> to vector<8x128xf32>
    %13 = vector.shape_cast %10 : vector<8x128xf32> to vector<1x8x128xf32>
    tpu.vector_store %arg4[%c0_7, %c0_8, %c0_9], %13 {strides = array<i32>} : memref<1x8x128xf32, #tpu.memory_space<vmem>>, vector<1x8x128xf32>,
    %14 = vector.shape_cast %2 : vector<8x128xf32> to vector<1x8x128xf32>
    %cst_10 = arith.constant dense<0.000000e+00> : vector<8x128xf32>
    %15 = vector.multi_reduction <add>, %14, %cst_10 [0] : vector<1x8x128xf32> to vector<8x128xf32>
    %c0_11 = arith.constant 0 : index
    %c0_12 = arith.constant 0 : index
    %c0_13 = arith.constant 0 : index
    %16 = vector.load %arg5[%c0_11, %c0_12, %c0_13] : memref<1x8x128xf32, #tpu.memory_space<vmem>>, vector<1x8x128xf32>
    %17 = vector.shape_cast %16 : vector<1x8x128xf32> to vector<8x128xf32>
    %18 = vector.shape_cast %15 : vector<8x128xf32> to vector<1x8x128xf32>
    tpu.vector_store %arg5[%c0_11, %c0_12, %c0_13], %18 {strides = array<i32>} : memref<1x8x128xf32, #tpu.memory_space<vmem>>, vector<1x8x128xf32>,
    return
  }
  func.func @transform_0(%arg0: i32) -> (i32, i32) {
    %c0_i32 = arith.constant 0 : i32
    %c0_i32_0 = arith.constant 0 : i32
    return %arg0, %c0_i32 : i32, i32
  }
  func.func @transform_1(%arg0: i32) -> (i32, i32) {
    %c0_i32 = arith.constant 0 : i32
    %c0_i32_0 = arith.constant 0 : i32
    return %arg0, %c0_i32 : i32, i32
  }
  func.func @transform_2(%arg0: i32) -> (i32, i32) {
    %c0_i32 = arith.constant 0 : i32
    %c0_i32_0 = arith.constant 0 : i32
    return %arg0, %c0_i32 : i32, i32
  }
  func.func @transform_3(%arg0: i32) -> (i32, i32, i32) {
    %c0_i32 = arith.constant 0 : i32
    %c0_i32_0 = arith.constant 0 : i32
    %c0_i32_1 = arith.constant 0 : i32
    return %arg0, %c0_i32, %c0_i32_0 : i32, i32, i32
  }
  func.func @transform_4(%arg0: i32) -> (i32, i32, i32) {
    %c0_i32 = arith.constant 0 : i32
    %c0_i32_0 = arith.constant 0 : i32
    %c0_i32_1 = arith.constant 0 : i32
    return %arg0, %c0_i32, %c0_i32_0 : i32, i32, i32
  }
}

</mosaic_0001>

<llo_original>
// kernel: trimmed_mae_loss.1
$region0: #{trimmed_mae_loss.1}
  #allocation0 [shape = 'u32[]', space=smem, size = 0x4, offset = 0x4, fixed_abs, tag = 'smem constant byte address 0x4 - core index']
  #allocation1 [shape = 'u32[144,128]{1,0:T(1,128)}', space=vmem, size = 0x12000, scoped, tag = 'internal scratch']
  %s0 = inlined_call_operand.vmem [shape: f32[8,128], index: 0, kind: input, shape index: {}]
  %s1 = inlined_call_operand.vmem [shape: f32[8,128], index: 1, kind: input, shape index: {}]
  %s2 = inlined_call_operand.vmem [shape: f32[8,128], index: 2, kind: input, shape index: {}]
  %s3 = inlined_call_operand.vmem [shape: f32[1,8,128], index: 3, kind: output, shape index: {0}]
  %s4 = inlined_call_operand.vmem [shape: f32[1,8,128], index: 4, kind: output, shape index: {1}]
  %5 = xla_tuple %s3, %s4
  %s6 = sld [smem:[#allocation0]]
  $region30: #{trimmed_mae_loss.1} parent=0
    _
  %s8 = ssub.s32 1, %s6
  %s9 = scalar_select 0, %s8, %s6
  // Predicated region
  $region2: #{trimmed_mae_loss.1} parent=0 // pred_check
    _
  $region3: #{trimmed_mae_loss.1} parent=0 // pred_check_branch
    %11 = sbr.rel (0) target = $region5
  $region4: #{trimmed_mae_loss.1} parent=0 // pred_region
    _
  $region5: #{trimmed_mae_loss.1} parent=0 // pred_fallthru
    _
  // Predicated region
  $region6: #{trimmed_mae_loss.1} parent=0 // pred_check
    _
  $region7: #{trimmed_mae_loss.1} parent=0 // pred_check_branch
    %13 = sbr.rel (0) target = $region9
  $region8: #{trimmed_mae_loss.1} parent=0 // pred_region
    _
  $region9: #{trimmed_mae_loss.1} parent=0 // pred_fallthru
    _
  // Predicated region
  $region10: #{trimmed_mae_loss.1} parent=0 // pred_check
    _
  $region11: #{trimmed_mae_loss.1} parent=0 // pred_check_branch
    %15 = sbr.rel (0) target = $region13
  $region12: #{trimmed_mae_loss.1} parent=0 // pred_region
    _
  $region13: #{trimmed_mae_loss.1} parent=0 // pred_fallthru
    _
  %v16 = vld [vmem:[%s0] sm:$0xff]
  %v17 = vld [vmem:[%s1] sm:$0xff]
  %v18 = vld [vmem:[%s2] sm:$0xff]
  %vm19 = vcmp.ne.f32.partialorder %v18, 0.0
  %v20 = vsub.f32 %v16, %v17
  %v21 = vand.u32 2147483647, %v20
  %v22 = vsel %vm19, %v21, 0.0
  %v23 = vadd.f32 %v22, 0.0
  %24 = vst [vmem:[%s3] sm:$0xff] %v23
  %v25 = vadd.f32 %v18, 0.0
  %26 = vst [vmem:[%s4] sm:$0xff] %v25
  // Predicated region
  $region14: #{trimmed_mae_loss.1} parent=0 // pred_check
    _
  $region15: #{trimmed_mae_loss.1} parent=0 // pred_check_branch
    %28 = sbr.rel (0) target = $region17
  $region16: #{trimmed_mae_loss.1} parent=0 // pred_region
    _
  $region17: #{trimmed_mae_loss.1} parent=0 // pred_fallthru
    _
  // Predicated region
  $region18: #{trimmed_mae_loss.1} parent=0 // pred_check
    _
  $region19: #{trimmed_mae_loss.1} parent=0 // pred_check_branch
    %30 = sbr.rel (0) target = $region21
  $region20: #{trimmed_mae_loss.1} parent=0 // pred_region
    _
  $region21: #{trimmed_mae_loss.1} parent=0 // pred_fallthru
    _
  // Predicated region
  $region22: #{trimmed_mae_loss.1} parent=0 // pred_check
    _
  $region23: #{trimmed_mae_loss.1} parent=0 // pred_check_branch
    %32 = sbr.rel (0) target = $region25
  $region24: #{trimmed_mae_loss.1} parent=0 // pred_region
    _
  $region25: #{trimmed_mae_loss.1} parent=0 // pred_fallthru
    _
  // Predicated region
  $region26: #{trimmed_mae_loss.1} parent=0 // pred_check
    _
  $region27: #{trimmed_mae_loss.1} parent=0 // pred_check_branch
    %34 = sbr.rel (0) target = $region29
  $region28: #{trimmed_mae_loss.1} parent=0 // pred_region
    _
  $region29: #{trimmed_mae_loss.1} parent=0 // pred_fallthru
    _

</llo_original>
